<compile_context>
chip_gen: v5e
topology: v5e:2x2
jax: 0.10.0
libtpu: 0.0.40
codegen_flags: <defaults>
</compile_context>

<pallas_src>
import numpy as np
import jax
import jax.numpy as jnp
from jax.experimental import pallas as pl
from jax.experimental.pallas import tpu as pltpu


def _round_up(x: int, m: int) -> int:
    return ((x + m - 1) // m) * m


def _gcn_bsr_kernel(cnt_ref, bk_ref, adj_ref, emb_ref, out_ref):
    # grid = (row-blocks i [parallel], output col-blocks j [parallel],
    #         nonzero-k-blocks g [arbitrary / reduction])
    i = pl.program_id(0)
    g = pl.program_id(2)

    @pl.when(g == 0)
    def _():
        out_ref[...] = jnp.zeros_like(out_ref)

    # Only the first cnt_ref[i] steps of row-block i carry real (nonzero)
    # adjacency tiles; the remaining steps up to the global max are skipped.
    @pl.when(g < cnt_ref[i])
    def _():
        out_ref[...] += jnp.dot(
            adj_ref[...], emb_ref[...], preferred_element_type=jnp.float32
        )


def gcn_layer(
    adj: jax.Array,
    embeds: jax.Array,
    *,
    tm: int = 512,
    tk: int = 512,
    tn: int = 512,
    compute_dtype=jnp.bfloat16,
    block_sparse: bool = True,
):
    """out = adj @ embeds, same semantics as torch.spmm(adj, embeds)."""
    N, K = adj.shape
    K2, D = embeds.shape
    assert K == K2, "adj columns must match embeds rows"
    out_dtype = embeds.dtype

    # --- tile sizes (clamped to padded problem, multiples of 128) -----------
    tm = min(tm, _round_up(N, 128))
    tk = min(tk, _round_up(K, 128))
    tn = min(tn, _round_up(D, 128))
    n_pad, k_pad, d_pad = _round_up(N, tm), _round_up(K, tk), _round_up(D, tn)

    adj_p = adj if (n_pad == N and k_pad == K) else jnp.pad(
        adj, ((0, n_pad - N), (0, k_pad - K)))
    emb_p = embeds if (k_pad == K and d_pad == D) else jnp.pad(
        embeds, ((0, k_pad - K), (0, d_pad - D)))

    nb_i, nb_k, nb_j = n_pad // tm, k_pad // tk, d_pad // tn

    # --- host-side block-sparse schedule -------------------------------------
    blk_nz = None
    if block_sparse:
        try:
            blk_mask = jnp.max(
                jnp.abs(adj_p).reshape(nb_i, tm, nb_k, tk), axis=(1, 3)) > 0
            blk_nz = np.asarray(jax.device_get(blk_mask))
        except jax.errors.ConcretizationTypeError:
            blk_nz = None  # traced adjacency -> fall back to dense schedule
    if blk_nz is None:
        blk_nz = np.ones((nb_i, nb_k), dtype=bool)

    counts = blk_nz.sum(axis=1).astype(np.int32)          # nonzero k-blocks per row-block
    max_cnt = max(int(counts.max()), 1)
    bk_tbl = np.zeros((nb_i, max_cnt), dtype=np.int32)
    for bi in range(nb_i):
        ks = np.nonzero(blk_nz[bi])[0].astype(np.int32)
        if ks.size == 0:
            ks = np.zeros((1,), dtype=np.int32)            # dummy; compute is skipped (cnt=0)
        bk_tbl[bi, :ks.size] = ks
        bk_tbl[bi, ks.size:] = ks[-1]                      # skipped steps reuse same tile -> no DMA
    bk_flat = jnp.asarray(bk_tbl.reshape(-1))              # flat 1-D (SMEM-friendly)
    counts_dev = jnp.asarray(counts)

    # Data-dependent index maps (scalar-prefetch refs are trailing args).
    adj_spec = pl.BlockSpec(
        (tm, tk), lambda i, j, g, cnt, bk: (i, bk[i * max_cnt + g]))
    emb_spec = pl.BlockSpec(
        (tk, tn), lambda i, j, g, cnt, bk: (bk[i * max_cnt + g], j))
    out_spec = pl.BlockSpec(
        (tm, tn), lambda i, j, g, cnt, bk: (i, j))

    itemsize = jnp.dtype(compute_dtype).itemsize
    n_nz_blocks = int(counts.sum())
    cost = pl.CostEstimate(
        flops=2 * n_nz_blocks * tm * tk * d_pad,
        transcendentals=0,
        bytes_accessed=(
            nb_j * n_nz_blocks * tm * tk * itemsize        # streamed adj tiles
            + nb_j * n_nz_blocks * tk * tn * itemsize      # embeds tiles
            + n_pad * d_pad * 4                            # f32 output
        ),
    )

    out_padded = pl.pallas_call(
        _gcn_bsr_kernel,
        out_shape=jax.ShapeDtypeStruct((n_pad, d_pad), jnp.float32),
        grid_spec=pltpu.PrefetchScalarGridSpec(
            num_scalar_prefetch=2,
            grid=(nb_i, nb_j, max_cnt),
            in_specs=[adj_spec, emb_spec],
            out_specs=out_spec,
        ),
        compiler_params=pltpu.CompilerParams(
            dimension_semantics=("parallel", "parallel", "arbitrary"),
        ),
        cost_estimate=cost,
    )(
        counts_dev,
        bk_flat,
        adj_p.astype(compute_dtype),
        emb_p.astype(compute_dtype),
    )

    return out_padded[:N, :D].astype(out_dtype)


if __name__ == "__main__":
    key = jax.random.PRNGKey(0)
    k_adj, k_emb = jax.random.split(key)

    # Small graph: 250 nodes (not a tile multiple -> exercises padding),
    # 96-dim embeddings.  ~5% dense adjacency + self loops; the top-right
    # quadrant is zeroed so at least one 128x128 adjacency tile is all-zero and
    # the block-sparse skip path is exercised.
    N, D = 250, 96
    raw = jax.random.uniform(k_adj, (N, N), dtype=jnp.float32)
    adj = (raw < 0.05).astype(jnp.float32) + jnp.eye(N, dtype=jnp.float32)
    adj = adj.at[:128, 128:].set(0.0)                     # adj block (0, 1) all zero
    adj = adj / jnp.sum(adj, axis=1, keepdims=True)       # row-normalize in f32

    embeds = jax.random.normal(k_emb, (N, D), dtype=jnp.float32)

    ref = adj @ embeds

    # f32 path, small tiles: forces a 2x2 block grid with one skipped zero tile.
    out_f32 = gcn_layer(adj, embeds, tm=128, tk=128, tn=128,
                        compute_dtype=jnp.float32)
    out_f32 = jax.block_until_ready(out_f32)
    assert out_f32.shape == (N, D)
    assert jnp.allclose(out_f32, ref, atol=1e-4, rtol=1e-4)

    # Default path: bf16 inputs with f32 MXU accumulation, large clamped tiles.
    out = gcn_layer(adj, embeds)
    out = jax.block_until_ready(out)
    assert out.shape == (N, D)
    assert jnp.allclose(out, ref, atol=2e-2, rtol=2e-2)

    print("KERNEL_OK")
</pallas_src>

<mosaic_0001>
module attributes {stable_mosaic.version = 11 : i64} {
  func.func @_gcn_bsr_kernel(%arg0: i32, %arg1: i32, %arg2: i32, %arg3: memref<2xi32, #tpu.memory_space<smem>>, %arg4: memref<4xi32, #tpu.memory_space<smem>>, %arg5: memref<128x128xf32, #tpu.memory_space<vmem>>, %arg6: memref<128x128xf32, #tpu.memory_space<vmem>>, %arg7: memref<128x128xf32, #tpu.memory_space<vmem>>) attributes {dimension_semantics = [#tpu.dimension_semantics<parallel>, #tpu.dimension_semantics<parallel>, #tpu.dimension_semantics<arbitrary>], iteration_bounds = array<i64: 2, 1, 2>, scalar_prefetch = 2 : i64, scratch_operands = 0 : i64, tpu.core_type = #tpu.core_type<tc>, window_params = [{transform_indices = @transform_0, window_bounds = array<i64: 128, 128>}, {transform_indices = @transform_1, window_bounds = array<i64: 128, 128>}, {transform_indices = @transform_2, window_bounds = array<i64: 128, 128>}]} {
    %c0_i32 = arith.constant 0 : i32
    %0 = arith.cmpi eq, %arg2, %c0_i32 : i32
    %1 = arith.extui %0 : i1 to i32
    %c0_i32_0 = arith.constant 0 : i32
    %2 = arith.cmpi ne, %1, %c0_i32_0 : i32
    scf.if %2 {
      %cst = arith.constant 0.000000e+00 : f32
      %8 = vector.broadcast %cst : f32 to vector<128x128xf32>
      %c0 = arith.constant 0 : index
      %c0_2 = arith.constant 0 : index
      %9 = vector.load %arg7[%c0, %c0_2] : memref<128x128xf32, #tpu.memory_space<vmem>>, vector<128x128xf32>
      tpu.vector_store %arg7[%c0, %c0_2], %8 {strides = array<i32>} : memref<128x128xf32, #tpu.memory_space<vmem>>, vector<128x128xf32>,
    } else {
    }
    %3 = arith.index_cast %arg0 : i32 to index
    %4 = memref.load %arg3[%3] : memref<2xi32, #tpu.memory_space<smem>>
    %5 = arith.cmpi slt, %arg2, %4 : i32
    %6 = arith.extui %5 : i1 to i32
    %c0_i32_1 = arith.constant 0 : i32
    %7 = arith.cmpi ne, %6, %c0_i32_1 : i32
    scf.if %7 {
      %c0 = arith.constant 0 : index
      %c0_2 = arith.constant 0 : index
      %8 = vector.load %arg7[%c0, %c0_2] : memref<128x128xf32, #tpu.memory_space<vmem>>, vector<128x128xf32>
      %c0_3 = arith.constant 0 : index
      %c0_4 = arith.constant 0 : index
      %9 = vector.load %arg5[%c0_3, %c0_4] : memref<128x128xf32, #tpu.memory_space<vmem>>, vector<128x128xf32>
      %c0_5 = arith.constant 0 : index
      %c0_6 = arith.constant 0 : index
      %10 = vector.load %arg6[%c0_5, %c0_6] : memref<128x128xf32, #tpu.memory_space<vmem>>, vector<128x128xf32>
      %cst = arith.constant dense<0.000000e+00> : vector<128x128xf32>
      %11 = tpu.matmul %9, %10, %cst {dimension_numbers = #tpu.dot_dimension_numbers<[1], [0], [0], [1], [0, 0, 1, 1], [], []>} : vector<128x128xf32>, vector<128x128xf32>, vector<128x128xf32> -> vector<128x128xf32>
      %12 = arith.addf %8, %11 : vector<128x128xf32>
      %c0_7 = arith.constant 0 : index
      %c0_8 = arith.constant 0 : index
      %13 = vector.load %arg7[%c0_7, %c0_8] : memref<128x128xf32, #tpu.memory_space<vmem>>, vector<128x128xf32>
      tpu.vector_store %arg7[%c0_7, %c0_8], %12 {strides = array<i32>} : memref<128x128xf32, #tpu.memory_space<vmem>>, vector<128x128xf32>,
    } else {
    }
    return
  }
  func.func @transform_0(%arg0: i32, %arg1: i32, %arg2: i32, %arg3: memref<2xi32, #tpu.memory_space<smem>>, %arg4: memref<4xi32, #tpu.memory_space<smem>>) -> (i32, i32) {
    %c2_i32 = arith.constant 2 : i32
    %0 = arith.muli %arg0, %c2_i32 : i32
    %1 = arith.addi %0, %arg2 : i32
    %2 = arith.index_cast %1 : i32 to index
    %3 = memref.load %arg4[%2] : memref<4xi32, #tpu.memory_space<smem>>
    %c0_i32 = arith.constant 0 : i32
    return %arg0, %3 : i32, i32
  }
  func.func @transform_1(%arg0: i32, %arg1: i32, %arg2: i32, %arg3: memref<2xi32, #tpu.memory_space<smem>>, %arg4: memref<4xi32, #tpu.memory_space<smem>>) -> (i32, i32) {
    %c2_i32 = arith.constant 2 : i32
    %0 = arith.muli %arg0, %c2_i32 : i32
    %1 = arith.addi %0, %arg2 : i32
    %2 = arith.index_cast %1 : i32 to index
    %3 = memref.load %arg4[%2] : memref<4xi32, #tpu.memory_space<smem>>
    %c0_i32 = arith.constant 0 : i32
    return %3, %arg1 : i32, i32
  }
  func.func @transform_2(%arg0: i32, %arg1: i32, %arg2: i32, %arg3: memref<2xi32, #tpu.memory_space<smem>>, %arg4: memref<4xi32, #tpu.memory_space<smem>>) -> (i32, i32) {
    %c0_i32 = arith.constant 0 : i32
    return %arg0, %arg1 : i32, i32
  }
}

</mosaic_0001>

<llo_original>
// kernel: tpu_custom_call.1
$region0: #{tpu_custom_call.1}
  #allocation0 [shape = 'u32[]', space=smem, size = 0x4, offset = 0x4, fixed_abs, tag = 'smem constant byte address 0x4 - core index']
  #allocation1 [shape = 'u32[72,128]{1,0:T(1,128)}', space=vmem, size = 0x9000, scoped, tag = 'internal scratch']
  #allocation2 [shape = 's32[1]{0}', space=sflag, size = 0x4, scoped, tag = 'scoped memory for tpu_custom_call.1']
  #allocation3 [shape = 'u8[512]{0}', space=smem, size = 0x200, scoped, tag = 'prefetched SMEM operand 0']
  #allocation4 [shape = 'u8[512]{0}', space=smem, size = 0x200, scoped, tag = 'prefetched SMEM operand 1']
  %s0 = inlined_call_operand.hbm [shape: s32[2], index: 0, kind: input, shape index: {}]
  %s1 = inlined_call_operand.hbm [shape: s32[4], index: 1, kind: input, shape index: {}]
  %s2 = inlined_call_operand.hbm [shape: f32[256,256], index: 2, kind: input, shape index: {}]
  %s3 = inlined_call_operand.hbm [shape: f32[256,128], index: 3, kind: input, shape index: {}]
  %s4 = inlined_call_operand.hbm [shape: f32[256,128], index: 4, kind: output, shape index: {}]
  %s5 = sld [smem:[#allocation0]]
  $region57: #{tpu_custom_call.1} parent=0
    _
  %s7 = ssub.s32 1, %s5
  %s8 = scalar_select 0, %s7, %s5
  %s10 = sshll.u32 %s0, 4
  %s11 = int_to_ptr.hbm [resolvable:$true] %s10
  %13 = dma.hbm_to_smem %s11, 16, [#allocation3], [#allocation2]
  %s15 = sshll.u32 %s1, 4
  %s16 = int_to_ptr.hbm [resolvable:$true] %s15
  %18 = dma.hbm_to_smem %s16, 16, [#allocation4], [#allocation2]
  %20 = dma.done [#allocation2], 32
  %21 = sfence
  $region1: #{tpu_custom_call.1} parent=0
    #allocation5 [shape = 'u8[131072]{0}', space=vmem, size = 0x20000, scoped, tag = 'input window, operand 2']
    #allocation6 [shape = 's32[2]{0}', space=sflag, size = 0x8, scoped, tag = 'scoped memory for tpu_custom_call.1']
    #allocation7 [shape = 's32[2]{0}', space=sflag, size = 0x8, scoped, tag = 'scoped memory for tpu_custom_call.1']
    #allocation8 [shape = 'u8[131072]{0}', space=vmem, size = 0x20000, scoped, tag = 'input window, operand 3']
    #allocation9 [shape = 's32[2]{0}', space=sflag, size = 0x8, scoped, tag = 'scoped memory for tpu_custom_call.1']
    #allocation10 [shape = 'u8[131072]{0}', space=vmem, size = 0x20000, scoped, tag = 'output window, operand 0']
    %22 = vsyncpa [#allocation6], 0
    %s23 = scalar_lea.sflag [#allocation6], 1
    %24 = vsyncpa %s23, 0
    %25 = vsyncpa [#allocation9], 0
    %s26 = scalar_lea.sflag [#allocation9], 1
    %27 = vsyncpa %s26, 0
    %28 = vsyncpa [#allocation7], 0
    %s29 = scalar_lea.sflag [#allocation7], 1
    %30 = vsyncpa %s29, 0
    loop: start=0, step=1, limit=6
    $region2: #{tpu_custom_call.1} parent=1 // loop_pre_header
      _
    $region3: #{tpu_custom_call.1} parent=1 // loop_header
      %s32 = sphi 0, %s36
      %p33 = scmp.ge.s32.totalorder %s32, 6
      %s39 = sphi 0, %s58
      %s40 = sphi 0, %s54
      %s41 = sphi 0, %s50
      %s42 = sphi 0, %s39
      %s43 = sphi 0, %s40
      %s44 = sphi 0, %s41
      %s45 = sphi 0, %s42
      %s46 = sphi 0, %s43
      %s47 = sphi 0, %s44
      %s69 = sphi 0, %s71
      %s72 = sphi 0, %s69
      %s73 = sphi 0, %s72
      %s89 = sphi 0, %s73
      %s103 = sphi 0, %s105
      %s106 = sphi 0, %s103
      %s107 = sphi 0, %s106
      %s123 = sphi 0, %s107
      %s131 = sphi 0, %s133
      %s134 = sphi 0, %s131
      %s135 = sphi 0, %s134
      %s151 = sphi 0, %s135
    $region4: #{tpu_custom_call.1} parent=1 // loop_header_branch
      %35 = sbr.rel (%p33) target = $region8
    $region5: #{tpu_custom_call.1} parent=1 // loop_body
      %s37 = ssub.s32 %s32, 1
      %s38 = ssub.s32 %s32, 2
      %s48 = sadd.s32 1, %s41
      %p49 = scmp.ge.s32.totalorder %s48, 2
      %s50 = scalar_select %p49, 0, %s48
      %s51 = sadd.s32 1, %s40
      %s52 = scalar_select %p49, %s51, %s40
      %p53 = scmp.ge.s32.totalorder %s52, 1
      %s54 = scalar_select %p53, 0, %s52
      %s55 = sadd.s32 1, %s39
      %s56 = scalar_select %p53, %s55, %s39
      %p57 = scmp.ge.s32.totalorder %s56, 2
      %s58 = scalar_select %p57, 0, %s56
      %s59 = smul.u32 %s39, 2
      %s60 = sadd.s32 %s59, %s41
      %s61 = sld [smem:[#allocation4 + %s60]]
      %s62 = smul.u32 %s58, 2
      %s63 = sadd.s32 %s62, %s50
      %s64 = sld [smem:[#allocation4 + %s63]]
      %s65 = ssub.s32 %s39, %s58
      %s66 = ssub.s32 %s61, %s64
      %s67 = sor.u32 %s65, %s66
      %p68 = scmp.eq.s32.totalorder %s67, 0
      %s70 = sadd.s32 %s69, 1
      %s71 = scalar_select %p68, %s69, %s70
      %p74 = pneg %p68
      %p75 = scmp.eq.s32.totalorder %s32, 3
      %p76 = por %p74, %p75
      %p77 = scmp.ne.s32.totalorder %s69, %s72
      %p78 = scmp.eq.s32.totalorder %s32, 0
      %p79 = por %p77, %p78
      %p80 = scmp.ne.s32.totalorder %s69, %s72
      %p81 = scmp.eq.s32.totalorder %s37, 3
      %p82 = por %p80, %p81
      %p83 = scmp.ne.s32.totalorder %s72, %s73
      %p84 = scmp.eq.s32.totalorder %s37, 0
      %p85 = por %p83, %p84
      %p86 = scmp.ne.s32.totalorder %s72, %s73
      %p87 = scmp.eq.s32.totalorder %s38, 3
      %p88 = por %p86, %p87
      %p90 = scmp.ne.s32.totalorder %s73, %s89
      %p91 = scmp.eq.s32.totalorder %s38, 0
      %p92 = por %p90, %p91
      %s93 = smul.u32 %s39, 2
      %s94 = sadd.s32 %s93, %s41
      %s95 = sld [smem:[#allocation4 + %s94]]
      %s96 = smul.u32 %s58, 2
      %s97 = sadd.s32 %s96, %s50
      %s98 = sld [smem:[#allocation4 + %s97]]
      %s99 = ssub.s32 %s95, %s98
      %s100 = ssub.s32 %s40, %s54
      %s101 = sor.u32 %s99, %s100
      %p102 = scmp.eq.s32.totalorder %s101, 0
      %s104 = sadd.s32 %s103, 1
      %s105 = scalar_select %p102, %s103, %s104
      %p108 = pneg %p102
      %p109 = scmp.eq.s32.totalorder %s32, 3
      %p110 = por %p108, %p109
      %p111 = scmp.ne.s32.totalorder %s103, %s106
      %p112 = scmp.eq.s32.totalorder %s32, 0
      %p113 = por %p111, %p112
      %p114 = scmp.ne.s32.totalorder %s103, %s106
      %p115 = scmp.eq.s32.totalorder %s37, 3
      %p116 = por %p114, %p115
      %p117 = scmp.ne.s32.totalorder %s106, %s107
      %p118 = scmp.eq.s32.totalorder %s37, 0
      %p119 = por %p117, %p118
      %p120 = scmp.ne.s32.totalorder %s106, %s107
      %p121 = scmp.eq.s32.totalorder %s38, 3
      %p122 = por %p120, %p121
      %p124 = scmp.ne.s32.totalorder %s107, %s123
      %p125 = scmp.eq.s32.totalorder %s38, 0
      %p126 = por %p124, %p125
      %s127 = ssub.s32 %s39, %s58
      %s128 = ssub.s32 %s40, %s54
      %s129 = sor.u32 %s127, %s128
      %p130 = scmp.eq.s32.totalorder %s129, 0
      %s132 = sadd.s32 %s131, 1
      %s133 = scalar_select %p130, %s131, %s132
      %p136 = pneg %p130
      %p137 = scmp.eq.s32.totalorder %s32, 3
      %p138 = por %p136, %p137
      %p139 = scmp.ne.s32.totalorder %s131, %s134
      %p140 = scmp.eq.s32.totalorder %s32, 0
      %p141 = por %p139, %p140
      %p142 = scmp.ne.s32.totalorder %s131, %s134
      %p143 = scmp.eq.s32.totalorder %s37, 3
      %p144 = por %p142, %p143
      %p145 = scmp.ne.s32.totalorder %s134, %s135
      %p146 = scmp.eq.s32.totalorder %s37, 0
      %p147 = por %p145, %p146
      %p148 = scmp.ne.s32.totalorder %s134, %s135
      %p149 = scmp.eq.s32.totalorder %s38, 3
      %p150 = por %p148, %p149
      %p152 = scmp.ne.s32.totalorder %s135, %s151
      %p153 = scmp.eq.s32.totalorder %s38, 0
      %p154 = por %p152, %p153
      %p155 = scmp.le.s32.totalorder 1, %s32
      %p156 = scmp.lt.s32.totalorder %s32, 5
      %p157 = pnand %p155, %p156
      %p158 = pneg %p157
      // Predicated region
      $region9: #{tpu_custom_call.1} parent=5 // pred_check
        _
      $region10: #{tpu_custom_call.1} parent=5 // pred_check_branch
        %160 = sbr.rel (%p157) target = $region12
      $region11: #{tpu_custom_call.1} parent=5 // pred_region
        %s161 = ssub.s32 %s32, 1
      $region12: #{tpu_custom_call.1} parent=5 // pred_fallthru
        _
      %p162 = scmp.lt.s32.totalorder %s32, 4
      // Predicated region
      $region13: #{tpu_custom_call.1} parent=5 // pred_check
        %p163 = pneg %p162
      $region14: #{tpu_custom_call.1} parent=5 // pred_check_branch
        %165 = sbr.rel (%p163) target = $region16
      $region15: #{tpu_custom_call.1} parent=5 // pred_region
        // Predicated region
        $region17: #{tpu_custom_call.1} parent=15 // pred_check
          %p166 = pneg %p79
        $region18: #{tpu_custom_call.1} parent=15 // pred_check_branch
          %168 = sbr.rel (%p166) target = $region20
        $region19: #{tpu_custom_call.1} parent=15 // pred_region
          %s169 = sand.u32 %s69, 1
          %s170 = scalar_lea.sflag [#allocation6], %s169
          %s171 = sand.u32 %s69, 1
          %s172 = smul.addr %s171, 128
          %s173 = scalar_lea.vmem [#allocation5], %s172
          %s174 = smul.u32 %s39, 2
          %s175 = sadd.s32 %s174, %s41
          %s176 = sld [smem:[#allocation4 + %s175]]
          %s177 = smul.u32 16, %s39
          %179 = vsyncadd %s170, 0
          %s180 = smul.addr %s177, 2
          %s181 = sadd.s32 %s176, %s180
          %s182 = smul.addr %s181, 8
          %s183 = scalar_lea.hbm %s2, %s182
          %s184 = sshll.u32 %s183, 4
          %s185 = int_to_ptr.hbm [resolvable:$true] %s184
          %s186 = sshll.u32 %s173, 4
          %s187 = int_to_ptr.vmem [resolvable:$true] %s186
          %192 = dma.hbm_to_vmem [thread:$0]  %s185, 2048, %s187, %s170, 256, 128, 8
        $region20: #{tpu_custom_call.1} parent=15 // pred_fallthru
          _
        // Predicated region
        $region21: #{tpu_custom_call.1} parent=15 // pred_check
          %p193 = pneg %p113
        $region22: #{tpu_custom_call.1} parent=15 // pred_check_branch
          %195 = sbr.rel (%p193) target = $region24
        $region23: #{tpu_custom_call.1} parent=15 // pred_region
          %s196 = sand.u32 %s103, 1
          %s197 = scalar_lea.sflag [#allocation9], %s196
          %s198 = sand.u32 %s103, 1
          %s199 = smul.addr %s198, 128
          %s200 = scalar_lea.vmem [#allocation8], %s199
          %s201 = smul.u32 %s39, 2
          %s202 = sadd.s32 %s201, %s41
          %s203 = sld [smem:[#allocation4 + %s202]]
          %s204 = smul.u32 16, %s203
          %206 = vsyncadd %s197, 0
          %s207 = sadd.s32 %s40, %s204
          %s208 = smul.addr %s207, 8
          %s209 = scalar_lea.hbm %s3, %s208
          %s210 = sshll.u32 %s209, 4
          %s211 = int_to_ptr.hbm [resolvable:$true] %s210
          %s212 = sshll.u32 %s200, 4
          %s213 = int_to_ptr.vmem [resolvable:$true] %s212
          %218 = dma.hbm_to_vmem [thread:$0]  %s211, 2048, %s213, %s197, 128, 128, 8
        $region24: #{tpu_custom_call.1} parent=15 // pred_fallthru
          _
      $region16: #{tpu_custom_call.1} parent=5 // pred_fallthru
        _
      %p219 = scmp.le.s32.totalorder 1, %s32
      %p220 = scmp.lt.s32.totalorder %s32, 5
      %p221 = pnand %p219, %p220
      %p222 = pneg %p221
      // Predicated region
      $region25: #{tpu_custom_call.1} parent=5 // pred_check
        _
      $region26: #{tpu_custom_call.1} parent=5 // pred_check_branch
        %224 = sbr.rel (%p221) target = $region28
      $region27: #{tpu_custom_call.1} parent=5 // pred_region
        %s225 = ssub.s32 %s32, 1
        %s226 = sand.u32 %s72, 1
        %s227 = scalar_lea.sflag [#allocation6], %s226
        %s228 = sand.u32 %s72, 1
        %s229 = smul.addr %s228, 128
        %s230 = scalar_lea.vmem [#allocation5], %s229
        // Predicated region
        $region29: #{tpu_custom_call.1} parent=27 // pred_check
          %p231 = pneg %p85
        $region30: #{tpu_custom_call.1} parent=27 // pred_check_branch
          %233 = sbr.rel (%p231) target = $region32
        $region31: #{tpu_custom_call.1} parent=27 // pred_region
          %235 = dma.done %s227, 2048
        $region32: #{tpu_custom_call.1} parent=27 // pred_fallthru
          _
        %s236 = sand.u32 %s106, 1
        %s237 = scalar_lea.sflag [#allocation9], %s236
        %s238 = sand.u32 %s106, 1
        %s239 = smul.addr %s238, 128
        %s240 = scalar_lea.vmem [#allocation8], %s239
        // Predicated region
        $region33: #{tpu_custom_call.1} parent=27 // pred_check
          %p241 = pneg %p119
        $region34: #{tpu_custom_call.1} parent=27 // pred_check_branch
          %243 = sbr.rel (%p241) target = $region36
        $region35: #{tpu_custom_call.1} parent=27 // pred_region
          %245 = dma.done %s237, 2048
        $region36: #{tpu_custom_call.1} parent=27 // pred_fallthru
          _
        %s246 = sand.u32 %s72, 1
        %s247 = scalar_lea.sflag [#allocation6], %s246
        %s248 = sand.u32 %s72, 1
        %s249 = smul.addr %s248, 128
        %s250 = scalar_lea.vmem [#allocation5], %s249
        %p251 = pneg %p85
        %p252 = pneg %p82
        %s253 = sand.u32 %s106, 1
        %s254 = scalar_lea.sflag [#allocation9], %s253
        %s255 = sand.u32 %s106, 1
        %s256 = smul.addr %s255, 128
        %s257 = scalar_lea.vmem [#allocation8], %s256
        %p258 = pneg %p119
        %p259 = pneg %p116
        %p260 = pneg %p147
        %p261 = pneg %p144
        %s262 = sand.u32 %s134, 1
        %s263 = scalar_lea.sflag [#allocation7], %s262
        %s264 = sand.u32 %s134, 1
        %s265 = smul.addr %s264, 128
        %s266 = scalar_lea.vmem [#allocation10], %s265
        %s267 = smul.u32 %s42, 2
        %s268 = sadd.s32 %s267, %s44
        %s269 = sld [smem:[#allocation4 + %s268]]
        %s270 = smul.u32 16, %s42
        %s271 = smul.u32 %s42, 2
        %s272 = sadd.s32 %s271, %s44
        %s273 = sld [smem:[#allocation4 + %s272]]
        %s274 = smul.u32 16, %s273
        %s275 = smul.u32 16, %s42
        %p276 = scmp.eq.s32.totalorder %s44, 0
        // Predicated region
        $region37: #{tpu_custom_call.1} parent=27 // pred_check
          %p277 = pneg %p276
        $region38: #{tpu_custom_call.1} parent=27 // pred_check_branch
          %279 = sbr.rel (%p277) target = $region40
        $region39: #{tpu_custom_call.1} parent=27 // pred_region
          %280 = vst [vmem:[%s266] sm:$0xff] 0.0
          %281 = vst [vmem:[%s266 + $0x8] sm:$0xff] 0.0
          %282 = vst [vmem:[%s266 + $0x10] sm:$0xff] 0.0
          %283 = vst [vmem:[%s266 + $0x18] sm:$0xff] 0.0
          %284 = vst [vmem:[%s266 + $0x20] sm:$0xff] 0.0
          %285 = vst [vmem:[%s266 + $0x28] sm:$0xff] 0.0
          %286 = vst [vmem:[%s266 + $0x30] sm:$0xff] 0.0
          %287 = vst [vmem:[%s266 + $0x38] sm:$0xff] 0.0
          %288 = vst [vmem:[%s266 + $0x40] sm:$0xff] 0.0
          %289 = vst [vmem:[%s266 + $0x48] sm:$0xff] 0.0
          %290 = vst [vmem:[%s266 + $0x50] sm:$0xff] 0.0
          %291 = vst [vmem:[%s266 + $0x58] sm:$0xff] 0.0
          %292 = vst [vmem:[%s266 + $0x60] sm:$0xff] 0.0
          %293 = vst [vmem:[%s266 + $0x68] sm:$0xff] 0.0
          %294 = vst [vmem:[%s266 + $0x70] sm:$0xff] 0.0
          %295 = vst [vmem:[%s266 + $0x78] sm:$0xff] 0.0
        $region40: #{tpu_custom_call.1} parent=27 // pred_fallthru
          _
        %s296 = sld [smem:[#allocation3 + %s42]]
        %p297 = scmp.lt.s32.totalorder %s44, %s296
        // Predicated region
        $region41: #{tpu_custom_call.1} parent=27 // pred_check
          %p298 = pneg %p297
        $region42: #{tpu_custom_call.1} parent=27 // pred_check_branch
          %300 = sbr.rel (%p298) target = $region44
        $region43: #{tpu_custom_call.1} parent=27 // pred_region
          %v301 = vld [vmem:[%s266] sm:$0xff]
          %v302 = vld [vmem:[%s266 + $0x8] sm:$0xff]
          %v303 = vld [vmem:[%s266 + $0x10] sm:$0xff]
          %v304 = vld [vmem:[%s266 + $0x18] sm:$0xff]
          %v305 = vld [vmem:[%s266 + $0x20] sm:$0xff]
          %v306 = vld [vmem:[%s266 + $0x28] sm:$0xff]
          %v307 = vld [vmem:[%s266 + $0x30] sm:$0xff]
          %v308 = vld [vmem:[%s266 + $0x38] sm:$0xff]
          %v309 = vld [vmem:[%s266 + $0x40] sm:$0xff]
          %v310 = vld [vmem:[%s266 + $0x48] sm:$0xff]
          %v311 = vld [vmem:[%s266 + $0x50] sm:$0xff]
          %v312 = vld [vmem:[%s266 + $0x58] sm:$0xff]
          %v313 = vld [vmem:[%s266 + $0x60] sm:$0xff]
          %v314 = vld [vmem:[%s266 + $0x68] sm:$0xff]
          %v315 = vld [vmem:[%s266 + $0x70] sm:$0xff]
          %v316 = vld [vmem:[%s266 + $0x78] sm:$0xff]
          %v317 = vld [vmem:[%s230] sm:$0xff]
          %v318 = vld [vmem:[%s230 + $0x8] sm:$0xff]
          %v319 = vld [vmem:[%s230 + $0x10] sm:$0xff]
          %v320 = vld [vmem:[%s230 + $0x18] sm:$0xff]
          %v321 = vld [vmem:[%s230 + $0x20] sm:$0xff]
          %v322 = vld [vmem:[%s230 + $0x28] sm:$0xff]
          %v323 = vld [vmem:[%s230 + $0x30] sm:$0xff]
          %v324 = vld [vmem:[%s230 + $0x38] sm:$0xff]
          %v325 = vld [vmem:[%s230 + $0x40] sm:$0xff]
          %v326 = vld [vmem:[%s230 + $0x48] sm:$0xff]
          %v327 = vld [vmem:[%s230 + $0x50] sm:$0xff]
          %v328 = vld [vmem:[%s230 + $0x58] sm:$0xff]
          %v329 = vld [vmem:[%s230 + $0x60] sm:$0xff]
          %v330 = vld [vmem:[%s230 + $0x68] sm:$0xff]
          %v331 = vld [vmem:[%s230 + $0x70] sm:$0xff]
          %v332 = vld [vmem:[%s230 + $0x78] sm:$0xff]
          %v333 = vld [vmem:[%s240] sm:$0xff]
          %v334 = vld [vmem:[%s240 + $0x8] sm:$0xff]
          %v335 = vld [vmem:[%s240 + $0x10] sm:$0xff]
          %v336 = vld [vmem:[%s240 + $0x18] sm:$0xff]
          %v337 = vld [vmem:[%s240 + $0x20] sm:$0xff]
          %v338 = vld [vmem:[%s240 + $0x28] sm:$0xff]
          %v339 = vld [vmem:[%s240 + $0x30] sm:$0xff]
          %v340 = vld [vmem:[%s240 + $0x38] sm:$0xff]
          %v341 = vld [vmem:[%s240 + $0x40] sm:$0xff]
          %v342 = vld [vmem:[%s240 + $0x48] sm:$0xff]
          %v343 = vld [vmem:[%s240 + $0x50] sm:$0xff]
          %v344 = vld [vmem:[%s240 + $0x58] sm:$0xff]
          %v345 = vld [vmem:[%s240 + $0x60] sm:$0xff]
          %v346 = vld [vmem:[%s240 + $0x68] sm:$0xff]
          %v347 = vld [vmem:[%s240 + $0x70] sm:$0xff]
          %v348 = vld [vmem:[%s240 + $0x78] sm:$0xff]
          %349 = vmatpush.msra.mxu0 %v348
          %350 = vmatpush.msra.mxu0 %v347
          %351 = vmatpush.msra.mxu0 %v346
          %352 = vmatpush.msra.mxu0 %v345
          %353 = vmatpush.msra.mxu0 %v344
          %354 = vmatpush.msra.mxu0 %v343
          %355 = vmatpush.msra.mxu0 %v342
          %356 = vmatpush.msra.mxu0 %v341
          %357 = vmatpush.msra.mxu0 %v340
          %358 = vmatpush.msra.mxu0 %v339
          %359 = vmatpush.msra.mxu0 %v338
          %360 = vmatpush.msra.mxu0 %v337
          %361 = vmatpush.msra.mxu0 %v336
          %362 = vmatpush.msra.mxu0 %v335
          %363 = vmatpush.msra.mxu0 %v334
          %364 = vmatpush.msra.mxu0 %v333
          %365 = vmatmul.f32.gmra.mxu0 %v317
          %v366 = vpop.f32.mrf.mxu0
          %v367 = vadd.f32 0.0, %v366
          %368 = vmatmul.f32.gmra.mxu0 %v318
          %v369 = vpop.f32.mrf.mxu0
          %v370 = vadd.f32 0.0, %v369
          %371 = vmatmul.f32.gmra.mxu0 %v319
          %v372 = vpop.f32.mrf.mxu0
          %v373 = vadd.f32 0.0, %v372
          %374 = vmatmul.f32.gmra.mxu0 %v320
          %v375 = vpop.f32.mrf.mxu0
          %v376 = vadd.f32 0.0, %v375
          %377 = vmatmul.f32.gmra.mxu0 %v321
          %v378 = vpop.f32.mrf.mxu0
          %v379 = vadd.f32 0.0, %v378
          %380 = vmatmul.f32.gmra.mxu0 %v322
          %v381 = vpop.f32.mrf.mxu0
          %v382 = vadd.f32 0.0, %v381
          %383 = vmatmul.f32.gmra.mxu0 %v323
          %v384 = vpop.f32.mrf.mxu0
          %v385 = vadd.f32 0.0, %v384
          %386 = vmatmul.f32.gmra.mxu0 %v324
          %v387 = vpop.f32.mrf.mxu0
          %v388 = vadd.f32 0.0, %v387
          %389 = vmatmul.f32.gmra.mxu0 %v325
          %v390 = vpop.f32.mrf.mxu0
          %v391 = vadd.f32 0.0, %v390
          %392 = vmatmul.f32.gmra.mxu0 %v326
          %v393 = vpop.f32.mrf.mxu0
          %v394 = vadd.f32 0.0, %v393
          %395 = vmatmul.f32.gmra.mxu0 %v327
          %v396 = vpop.f32.mrf.mxu0
          %v397 = vadd.f32 0.0, %v396
          %398 = vmatmul.f32.gmra.mxu0 %v328
          %v399 = vpop.f32.mrf.mxu0
          %v400 = vadd.f32 0.0, %v399
          %401 = vmatmul.f32.gmra.mxu0 %v329
          %v402 = vpop.f32.mrf.mxu0
          %v403 = vadd.f32 0.0, %v402
          %404 = vmatmul.f32.gmra.mxu0 %v330
          %v405 = vpop.f32.mrf.mxu0
          %v406 = vadd.f32 0.0, %v405
          %407 = vmatmul.f32.gmra.mxu0 %v331
          %v408 = vpop.f32.mrf.mxu0
          %v409 = vadd.f32 0.0, %v408
          %410 = vmatmul.f32.gmra.mxu0 %v332
          %v411 = vpop.f32.mrf.mxu0
          %v412 = vadd.f32 0.0, %v411
          %413 = vdwg.mxu0
          %v414 = vadd.f32 %v301, %v367
          %v415 = vadd.f32 %v302, %v370
          %v416 = vadd.f32 %v303, %v373
          %v417 = vadd.f32 %v304, %v376
          %v418 = vadd.f32 %v305, %v379
          %v419 = vadd.f32 %v306, %v382
          %v420 = vadd.f32 %v307, %v385
          %v421 = vadd.f32 %v308, %v388
          %v422 = vadd.f32 %v309, %v391
          %v423 = vadd.f32 %v310, %v394
          %v424 = vadd.f32 %v311, %v397
          %v425 = vadd.f32 %v312, %v400
          %v426 = vadd.f32 %v313, %v403
          %v427 = vadd.f32 %v314, %v406
          %v428 = vadd.f32 %v315, %v409
          %v429 = vadd.f32 %v316, %v412
          %430 = vst [vmem:[%s266] sm:$0xff] %v414
          %431 = vst [vmem:[%s266 + $0x8] sm:$0xff] %v415
          %432 = vst [vmem:[%s266 + $0x10] sm:$0xff] %v416
          %433 = vst [vmem:[%s266 + $0x18] sm:$0xff] %v417
          %434 = vst [vmem:[%s266 + $0x20] sm:$0xff] %v418
          %435 = vst [vmem:[%s266 + $0x28] sm:$0xff] %v419
          %436 = vst [vmem:[%s266 + $0x30] sm:$0xff] %v420
          %437 = vst [vmem:[%s266 + $0x38] sm:$0xff] %v421
          %438 = vst [vmem:[%s266 + $0x40] sm:$0xff] %v422
          %439 = vst [vmem:[%s266 + $0x48] sm:$0xff] %v423
          %440 = vst [vmem:[%s266 + $0x50] sm:$0xff] %v424
          %441 = vst [vmem:[%s266 + $0x58] sm:$0xff] %v425
          %442 = vst [vmem:[%s266 + $0x60] sm:$0xff] %v426
          %443 = vst [vmem:[%s266 + $0x68] sm:$0xff] %v427
          %444 = vst [vmem:[%s266 + $0x70] sm:$0xff] %v428
          %445 = vst [vmem:[%s266 + $0x78] sm:$0xff] %v429
        $region44: #{tpu_custom_call.1} parent=27 // pred_fallthru
          _
        %s446 = sand.u32 %s134, 1
        %s447 = scalar_lea.sflag [#allocation7], %s446
        %s448 = sand.u32 %s134, 1
        %s449 = smul.addr %s448, 128
        %s450 = scalar_lea.vmem [#allocation10], %s449
        // Predicated region
        $region45: #{tpu_custom_call.1} parent=27 // pred_check
          %p451 = pneg %p144
        $region46: #{tpu_custom_call.1} parent=27 // pred_check_branch
          %453 = sbr.rel (%p451) target = $region48
        $region47: #{tpu_custom_call.1} parent=27 // pred_region
          %s454 = smul.u32 16, %s42
          %456 = vsyncadd %s447, 0
          %s457 = sadd.s32 %s43, %s454
          %s458 = smul.addr %s457, 8
          %s459 = scalar_lea.hbm %s4, %s458
          %s460 = sshll.u32 %s450, 4
          %s461 = int_to_ptr.vmem [resolvable:$true] %s460
          %s462 = sshll.u32 %s459, 4
          %s463 = int_to_ptr.hbm [resolvable:$true] %s462
          %468 = dma.vmem_to_hbm [thread:$0]  %s461, 2048, %s463, %s447, 128, 128, 8
        $region48: #{tpu_custom_call.1} parent=27 // pred_fallthru
          _
      $region28: #{tpu_custom_call.1} parent=5 // pred_fallthru
        _
      %p469 = scmp.le.s32.totalorder 2, %s32
      // Predicated region
      $region49: #{tpu_custom_call.1} parent=5 // pred_check
        %p470 = pneg %p469
      $region50: #{tpu_custom_call.1} parent=5 // pred_check_branch
        %472 = sbr.rel (%p470) target = $region52
      $region51: #{tpu_custom_call.1} parent=5 // pred_region
        %s473 = ssub.s32 %s32, 2
        // Predicated region
        $region53: #{tpu_custom_call.1} parent=51 // pred_check
          %p474 = pneg %p150
        $region54: #{tpu_custom_call.1} parent=51 // pred_check_branch
          %476 = sbr.rel (%p474) target = $region56
        $region55: #{tpu_custom_call.1} parent=51 // pred_region
          %s477 = sand.u32 %s135, 1
          %s478 = scalar_lea.sflag [#allocation7], %s477
          %s479 = sand.u32 %s135, 1
          %s480 = smul.addr %s479, 128
          %s481 = scalar_lea.vmem [#allocation10], %s480
          %483 = dma.done %s478, 2048
        $region56: #{tpu_custom_call.1} parent=51 // pred_fallthru
          _
      $region52: #{tpu_custom_call.1} parent=5 // pred_fallthru
        _
    $region6: #{tpu_custom_call.1} parent=1 // loop_footer
      %s36 = sadd.s32 1, %s32
    $region7: #{tpu_custom_call.1} parent=1 // loop_footer_branch
      %31 = sbr.rel target = $region3
    $region8: #{tpu_custom_call.1} parent=1 // loop_exit
      _
    %484 = vsyncpa [#allocation6], 1
    %s485 = scalar_lea.sflag [#allocation6], 1
    %486 = vsyncpa %s485, 1
    %487 = vsyncpa [#allocation9], 1
    %s488 = scalar_lea.sflag [#allocation9], 1
    %489 = vsyncpa %s488, 1
    %490 = vsyncpa [#allocation7], 1
    %s491 = scalar_lea.sflag [#allocation7], 1
    %492 = vsyncpa %s491, 1

</llo_original>
